<compile_context>
chip_gen: v7x
topology: tpu7x:2x2x1
jax: 0.10.0
libtpu: 0.0.40
codegen_flags: <defaults>
</compile_context>

<pallas_src>
import functools

import jax
import jax.numpy as jnp
from jax.experimental import pallas as pl
from jax.experimental.pallas import tpu as pltpu


def _spatial_attention_kernel(rgb_ref, ir_ref, out_ref, *, inv_two_c):
    # rgb_ref / ir_ref / out_ref: (1, C, T) VMEM tiles, T lane-dense.
    rgb = rgb_ref[...]
    ir = ir_ref[...]

    # Reuse the elementwise sum for both the channel reduction and the output.
    s = rgb + ir                                                   # (1, C, T)

    sum_c = jnp.sum(s, axis=1, keepdims=True, dtype=jnp.float32)   # (1, 1, T)
    mean_c = sum_c * inv_two_c
    max_c = jnp.max(jnp.maximum(rgb, ir), axis=1,
                    keepdims=True).astype(jnp.float32)             # (1, 1, T)

    # Fold both sigmoid gates and the /2 into a single per-pixel scale.
    w = (jax.nn.sigmoid(mean_c) * jax.nn.sigmoid(max_c) * 0.5).astype(s.dtype)

    out_ref[...] = (s * w).astype(out_ref.dtype)


def _round_down_128(x):
    return (x // 128) * 128


def _round_up_128(x):
    return ((x + 127) // 128) * 128


def _vmem_budget_bytes():
    """(working-set budget for the 6 double-buffered blocks, vmem_limit)."""
    phys = 64 << 20  # conservative default = v7x per-TensorCore VMEM
    try:
        info = pltpu.get_tpu_info()
        phys = int(getattr(info, "vmem_capacity_bytes", phys)) or phys
    except Exception:
        pass
    # Raise the scoped limit well above the 16/32 MiB defaults but keep
    # headroom below physical VMEM (v7x 64 MiB -> 48 MiB; v5e/v6e -> ~96 MiB).
    vmem_limit = min((phys * 3) // 4, 100 << 20)
    # ~60% of the limit for the pipelined working set (3 refs x 2 buffers).
    working_budget = (vmem_limit * 3) // 5
    return working_budget, vmem_limit


def spatial_attention(rgb_feats, ir_feats):
    assert rgb_feats.shape == ir_feats.shape
    assert rgb_feats.dtype == ir_feats.dtype
    B, C, H, W = rgb_feats.shape
    HW = H * W
    itemsize = jnp.dtype(rgb_feats.dtype).itemsize

    # Lane-dense spatial axis: pad HW up to a multiple of 128.
    HW_pad = _round_up_128(HW)

    # VMEM-budget-derived spatial tile (3 refs x 2 pipeline buffers).
    budget, vmem_limit = _vmem_budget_bytes()
    t_max = budget // (6 * C * itemsize)
    T = max(128, _round_down_128(min(t_max, HW_pad)))

    # Megacore: with B == 1 make sure there are >= 2 grid iterations so both
    # v7x TensorCores get work (no-op when the map is a single 128 tile).
    if B == 1 and HW_pad > 128:
        half = max(128, _round_down_128(HW_pad // 2))
        T = min(T, half)

    num_spatial_tiles = pl.cdiv(HW_pad, T)

    rgb2 = rgb_feats.reshape(B, C, HW)
    ir2 = ir_feats.reshape(B, C, HW)
    if HW_pad != HW:
        pad = ((0, 0), (0, 0), (0, HW_pad - HW))
        rgb2 = jnp.pad(rgb2, pad)
        ir2 = jnp.pad(ir2, pad)

    blk = pl.BlockSpec((1, C, T), lambda b, s: (b, 0, s))
    kernel = functools.partial(_spatial_attention_kernel,
                               inv_two_c=1.0 / (2 * C))

    cost = pl.CostEstimate(
        flops=5 * B * C * HW_pad,
        transcendentals=2 * B * HW_pad,
        bytes_accessed=3 * B * C * HW_pad * itemsize,
    )

    out = pl.pallas_call(
        kernel,
        out_shape=jax.ShapeDtypeStruct((B, C, HW_pad), rgb_feats.dtype),
        grid=(B, num_spatial_tiles),
        in_specs=[blk, blk],
        out_specs=blk,
        compiler_params=pltpu.CompilerParams(
            dimension_semantics=("parallel", "parallel"),
            vmem_limit_bytes=int(vmem_limit),
        ),
        cost_estimate=cost,
    )(rgb2, ir2)

    if HW_pad != HW:
        out = out[:, :, :HW]
    return out.reshape(B, C, H, W)


def spatial_attention_ref(rgb_feats, ir_feats):
    # Pure-JAX reference mirroring the PyTorch forward exactly.
    B, C, H, W = rgb_feats.shape
    x_cat = jnp.concatenate([rgb_feats, ir_feats], axis=1)
    w_avg = jax.nn.sigmoid(jnp.mean(x_cat, axis=1))[:, None]
    w_max = jax.nn.sigmoid(jnp.max(x_cat, axis=1))[:, None]
    x_cat_w = x_cat * w_avg * w_max
    return (x_cat_w[:, :C] + x_cat_w[:, C:]) / 2


if __name__ == "__main__":
    key = jax.random.PRNGKey(0)
    k_rgb, k_ir = jax.random.split(key)

    # Main small-shape check (HW multiple of 128 -> no padding path).
    B, C, H, W = 2, 4, 16, 16
    rgb = jax.random.normal(k_rgb, (B, C, H, W), dtype=jnp.float32)
    ir = jax.random.normal(k_ir, (B, C, H, W), dtype=jnp.float32)

    out = jax.block_until_ready(spatial_attention(rgb, ir))
    ref = spatial_attention_ref(rgb, ir)
    assert out.shape == (B, C, H, W)
    assert jnp.allclose(out, ref, atol=1e-5, rtol=1e-5), "mismatch vs reference"

    # Padding path check (HW = 225, not a multiple of 128).
    rgb2 = jax.random.normal(k_rgb, (1, 4, 15, 15), dtype=jnp.float32)
    ir2 = jax.random.normal(k_ir, (1, 4, 15, 15), dtype=jnp.float32)
    out2 = jax.block_until_ready(spatial_attention(rgb2, ir2))
    ref2 = spatial_attention_ref(rgb2, ir2)
    assert out2.shape == rgb2.shape
    assert jnp.allclose(out2, ref2, atol=1e-5, rtol=1e-5), "mismatch (padded path)"

    print("KERNEL_OK")
</pallas_src>

<mosaic_0001>
module attributes {stable_mosaic.version = 11 : i64} {
  func.func @_spatial_attention_kernel(%arg0: i32, %arg1: i32, %arg2: memref<1x4x256xf32, #tpu.memory_space<vmem>>, %arg3: memref<1x4x256xf32, #tpu.memory_space<vmem>>, %arg4: memref<1x4x256xf32, #tpu.memory_space<vmem>>) attributes {dimension_semantics = [#tpu.dimension_semantics<parallel>, #tpu.dimension_semantics<parallel>], iteration_bounds = array<i64: 2, 1>, scalar_prefetch = 0 : i64, scratch_operands = 0 : i64, tpu.core_type = #tpu.core_type<tc>, window_params = [{transform_indices = @transform_0, window_bounds = array<i64: 1, 4, 256>}, {transform_indices = @transform_1, window_bounds = array<i64: 1, 4, 256>}, {transform_indices = @transform_2, window_bounds = array<i64: 1, 4, 256>}]} {
    %c0 = arith.constant 0 : index
    %c0_0 = arith.constant 0 : index
    %c0_1 = arith.constant 0 : index
    %0 = vector.load %arg2[%c0, %c0_0, %c0_1] : memref<1x4x256xf32, #tpu.memory_space<vmem>>, vector<1x4x256xf32>
    %c0_2 = arith.constant 0 : index
    %c0_3 = arith.constant 0 : index
    %c0_4 = arith.constant 0 : index
    %1 = vector.load %arg3[%c0_2, %c0_3, %c0_4] : memref<1x4x256xf32, #tpu.memory_space<vmem>>, vector<1x4x256xf32>
    %2 = arith.addf %0, %1 : vector<1x4x256xf32>
    %cst = arith.constant dense<0.000000e+00> : vector<1x256xf32>
    %3 = vector.multi_reduction <add>, %2, %cst [1] : vector<1x4x256xf32> to vector<1x256xf32>
    %4 = vector.shape_cast %3 : vector<1x256xf32> to vector<1x1x256xf32>
    %cst_5 = arith.constant 1.250000e-01 : f32
    %5 = vector.broadcast %cst_5 : f32 to vector<1x1x256xf32>
    %6 = arith.mulf %4, %5 : vector<1x1x256xf32>
    %7 = arith.maximumf %0, %1 : vector<1x4x256xf32>
    %cst_6 = arith.constant dense<0xFF800000> : vector<1x256xf32>
    %8 = vector.multi_reduction <maximumf>, %7, %cst_6 [1] : vector<1x4x256xf32> to vector<1x256xf32>
    %9 = vector.shape_cast %8 : vector<1x256xf32> to vector<1x1x256xf32>
    %10 = arith.negf %6 : vector<1x1x256xf32>
    %11 = math.exp %10 : vector<1x1x256xf32>
    %cst_7 = arith.constant 1.000000e+00 : f32
    %12 = vector.broadcast %cst_7 : f32 to vector<1x1x256xf32>
    %13 = arith.addf %12, %11 : vector<1x1x256xf32>
    %14 = arith.divf %12, %13 : vector<1x1x256xf32>
    %15 = arith.negf %9 : vector<1x1x256xf32>
    %16 = math.exp %15 : vector<1x1x256xf32>
    %cst_8 = arith.constant 1.000000e+00 : f32
    %17 = vector.broadcast %cst_8 : f32 to vector<1x1x256xf32>
    %18 = arith.addf %17, %16 : vector<1x1x256xf32>
    %19 = arith.divf %17, %18 : vector<1x1x256xf32>
    %20 = arith.mulf %14, %19 : vector<1x1x256xf32>
    %cst_9 = arith.constant 5.000000e-01 : f32
    %21 = vector.broadcast %cst_9 : f32 to vector<1x1x256xf32>
    %22 = arith.mulf %20, %21 : vector<1x1x256xf32>
    %23 = vector.broadcast %22 : vector<1x1x256xf32> to vector<1x4x256xf32>
    %24 = arith.mulf %2, %23 : vector<1x4x256xf32>
    %c0_10 = arith.constant 0 : index
    %c0_11 = arith.constant 0 : index
    %c0_12 = arith.constant 0 : index
    %25 = vector.load %arg4[%c0_10, %c0_11, %c0_12] : memref<1x4x256xf32, #tpu.memory_space<vmem>>, vector<1x4x256xf32>
    tpu.vector_store %arg4[%c0_10, %c0_11, %c0_12], %24 {strides = array<i32>} : memref<1x4x256xf32, #tpu.memory_space<vmem>>, vector<1x4x256xf32>,
    return
  }
  func.func @transform_0(%arg0: i32, %arg1: i32) -> (i32, i32, i32) {
    %c0_i32 = arith.constant 0 : i32
    %c0_i32_0 = arith.constant 0 : i32
    return %arg0, %c0_i32, %arg1 : i32, i32, i32
  }
  func.func @transform_1(%arg0: i32, %arg1: i32) -> (i32, i32, i32) {
    %c0_i32 = arith.constant 0 : i32
    %c0_i32_0 = arith.constant 0 : i32
    return %arg0, %c0_i32, %arg1 : i32, i32, i32
  }
  func.func @transform_2(%arg0: i32, %arg1: i32) -> (i32, i32, i32) {
    %c0_i32 = arith.constant 0 : i32
    %c0_i32_0 = arith.constant 0 : i32
    return %arg0, %c0_i32, %arg1 : i32, i32, i32
  }
}

</mosaic_0001>

<llo_original>
// kernel: tpu_custom_call.1
$region0: #{tpu_custom_call.1}
  #allocation0 [shape = 'u32[]', space=smem, size = 0x4, offset = 0x4, fixed_abs, tag = 'smem constant byte address 0x4 - core index']
  #allocation1 [shape = 'u32[144,128]{1,0:T(1,128)}', space=vmem, size = 0x12000, scoped, tag = 'internal scratch']
  %s0 = inlined_call_operand.hbm [shape: f32[2,4,256], index: 0, kind: input, shape index: {}]
  %s1 = inlined_call_operand.hbm [shape: f32[2,4,256], index: 1, kind: input, shape index: {}]
  %s2 = inlined_call_operand.hbm [shape: f32[2,4,256], index: 2, kind: output, shape index: {}]
  %s3 = sld [smem:[#allocation0]]
  $region49: #{tpu_custom_call.1} parent=0
    _
  %s5 = ssub.s32 1, %s3
  %s6 = scalar_select 0, %s5, %s3
  $region1: #{tpu_custom_call.1} parent=0
    #allocation2 [shape = 'u8[8192]{0}', space=vmem, size = 0x2000, scoped, tag = 'input window, operand 0']
    #allocation3 [shape = 's32[2]{0}', space=sflag, size = 0x8, scoped, tag = 'scoped memory for tpu_custom_call.1']
    #allocation4 [shape = 's32[2]{0}', space=sflag, size = 0x8, scoped, tag = 'scoped memory for tpu_custom_call.1']
    #allocation5 [shape = 'u8[8192]{0}', space=vmem, size = 0x2000, scoped, tag = 'input window, operand 1']
    #allocation6 [shape = 's32[2]{0}', space=sflag, size = 0x8, scoped, tag = 'scoped memory for tpu_custom_call.1']
    #allocation7 [shape = 'u8[8192]{0}', space=vmem, size = 0x2000, scoped, tag = 'output window, operand 0']
    %7 = vsyncpa [#allocation3], 0
    %s8 = scalar_lea.sflag [#allocation3], 1
    %9 = vsyncpa %s8, 0
    %10 = vsyncpa [#allocation6], 0
    %s11 = scalar_lea.sflag [#allocation6], 1
    %12 = vsyncpa %s11, 0
    %13 = vsyncpa [#allocation4], 0
    %s14 = scalar_lea.sflag [#allocation4], 1
    %15 = vsyncpa %s14, 0
    loop: start=0, step=1, limit=4
    $region2: #{tpu_custom_call.1} parent=1 // loop_pre_header
      _
    $region3: #{tpu_custom_call.1} parent=1 // loop_header
      %s17 = sphi 0, %s21
      %p18 = scmp.ge.s32.totalorder %s17, 4
      %s24 = sphi 0, %s36
      %s25 = sphi 0, %s32
      %s26 = sphi 0, %s24
      %s27 = sphi 0, %s25
      %s28 = sphi 0, %s26
      %s29 = sphi 0, %s27
      %s41 = sphi 0, %s43
      %s44 = sphi 0, %s41
      %s45 = sphi 0, %s44
      %s61 = sphi 0, %s45
      %s69 = sphi 0, %s71
      %s72 = sphi 0, %s69
      %s73 = sphi 0, %s72
      %s89 = sphi 0, %s73
      %s97 = sphi 0, %s99
      %s100 = sphi 0, %s97
      %s101 = sphi 0, %s100
      %s117 = sphi 0, %s101
    $region4: #{tpu_custom_call.1} parent=1 // loop_header_branch
      %20 = sbr.rel (%p18) target = $region8
    $region5: #{tpu_custom_call.1} parent=1 // loop_body
      %s22 = ssub.s32 %s17, 1
      %s23 = ssub.s32 %s17, 2
      %s30 = sadd.s32 1, %s25
      %p31 = scmp.ge.s32.totalorder %s30, 1
      %s32 = scalar_select %p31, 0, %s30
      %s33 = sadd.s32 1, %s24
      %s34 = scalar_select %p31, %s33, %s24
      %p35 = scmp.ge.s32.totalorder %s34, 2
      %s36 = scalar_select %p35, 0, %s34
      %s37 = ssub.s32 %s24, %s36
      %s38 = ssub.s32 %s25, %s32
      %s39 = sor.u32 %s37, %s38
      %p40 = scmp.eq.s32.totalorder %s39, 0
      %s42 = sadd.s32 %s41, 1
      %s43 = scalar_select %p40, %s41, %s42
      %p46 = pneg %p40
      %p47 = scmp.eq.s32.totalorder %s17, 1
      %p48 = por %p46, %p47
      %p49 = scmp.ne.s32.totalorder %s41, %s44
      %p50 = scmp.eq.s32.totalorder %s17, 0
      %p51 = por %p49, %p50
      %p52 = scmp.ne.s32.totalorder %s41, %s44
      %p53 = scmp.eq.s32.totalorder %s22, 1
      %p54 = por %p52, %p53
      %p55 = scmp.ne.s32.totalorder %s44, %s45
      %p56 = scmp.eq.s32.totalorder %s22, 0
      %p57 = por %p55, %p56
      %p58 = scmp.ne.s32.totalorder %s44, %s45
      %p59 = scmp.eq.s32.totalorder %s23, 1
      %p60 = por %p58, %p59
      %p62 = scmp.ne.s32.totalorder %s45, %s61
      %p63 = scmp.eq.s32.totalorder %s23, 0
      %p64 = por %p62, %p63
      %s65 = ssub.s32 %s24, %s36
      %s66 = ssub.s32 %s25, %s32
      %s67 = sor.u32 %s65, %s66
      %p68 = scmp.eq.s32.totalorder %s67, 0
      %s70 = sadd.s32 %s69, 1
      %s71 = scalar_select %p68, %s69, %s70
      %p74 = pneg %p68
      %p75 = scmp.eq.s32.totalorder %s17, 1
      %p76 = por %p74, %p75
      %p77 = scmp.ne.s32.totalorder %s69, %s72
      %p78 = scmp.eq.s32.totalorder %s17, 0
      %p79 = por %p77, %p78
      %p80 = scmp.ne.s32.totalorder %s69, %s72
      %p81 = scmp.eq.s32.totalorder %s22, 1
      %p82 = por %p80, %p81
      %p83 = scmp.ne.s32.totalorder %s72, %s73
      %p84 = scmp.eq.s32.totalorder %s22, 0
      %p85 = por %p83, %p84
      %p86 = scmp.ne.s32.totalorder %s72, %s73
      %p87 = scmp.eq.s32.totalorder %s23, 1
      %p88 = por %p86, %p87
      %p90 = scmp.ne.s32.totalorder %s73, %s89
      %p91 = scmp.eq.s32.totalorder %s23, 0
      %p92 = por %p90, %p91
      %s93 = ssub.s32 %s24, %s36
      %s94 = ssub.s32 %s25, %s32
      %s95 = sor.u32 %s93, %s94
      %p96 = scmp.eq.s32.totalorder %s95, 0
      %s98 = sadd.s32 %s97, 1
      %s99 = scalar_select %p96, %s97, %s98
      %p102 = pneg %p96
      %p103 = scmp.eq.s32.totalorder %s17, 1
      %p104 = por %p102, %p103
      %p105 = scmp.ne.s32.totalorder %s97, %s100
      %p106 = scmp.eq.s32.totalorder %s17, 0
      %p107 = por %p105, %p106
      %p108 = scmp.ne.s32.totalorder %s97, %s100
      %p109 = scmp.eq.s32.totalorder %s22, 1
      %p110 = por %p108, %p109
      %p111 = scmp.ne.s32.totalorder %s100, %s101
      %p112 = scmp.eq.s32.totalorder %s22, 0
      %p113 = por %p111, %p112
      %p114 = scmp.ne.s32.totalorder %s100, %s101
      %p115 = scmp.eq.s32.totalorder %s23, 1
      %p116 = por %p114, %p115
      %p118 = scmp.ne.s32.totalorder %s101, %s117
      %p119 = scmp.eq.s32.totalorder %s23, 0
      %p120 = por %p118, %p119
      %p121 = scmp.le.s32.totalorder 1, %s17
      %p122 = scmp.lt.s32.totalorder %s17, 3
      %p123 = pnand %p121, %p122
      %p124 = pneg %p123
      // Predicated region
      $region9: #{tpu_custom_call.1} parent=5 // pred_check
        _
      $region10: #{tpu_custom_call.1} parent=5 // pred_check_branch
        %126 = sbr.rel (%p123) target = $region12
      $region11: #{tpu_custom_call.1} parent=5 // pred_region
        %s127 = ssub.s32 %s17, 1
      $region12: #{tpu_custom_call.1} parent=5 // pred_fallthru
        _
      %p128 = scmp.lt.s32.totalorder %s17, 2
      // Predicated region
      $region13: #{tpu_custom_call.1} parent=5 // pred_check
        %p129 = pneg %p128
      $region14: #{tpu_custom_call.1} parent=5 // pred_check_branch
        %131 = sbr.rel (%p129) target = $region16
      $region15: #{tpu_custom_call.1} parent=5 // pred_region
        // Predicated region
        $region17: #{tpu_custom_call.1} parent=15 // pred_check
          %p132 = pneg %p51
        $region18: #{tpu_custom_call.1} parent=15 // pred_check_branch
          %134 = sbr.rel (%p132) target = $region20
        $region19: #{tpu_custom_call.1} parent=15 // pred_region
          %s135 = sand.u32 %s41, 1
          %s136 = scalar_lea.sflag [#allocation3], %s135
          %s137 = sand.u32 %s41, 1
          %s138 = smul.addr %s137, 8
          %s139 = scalar_lea.vmem [#allocation2], %s138
          %s140 = smul.u32 2, %s25
          %s142 = ssub.s32 128, 128
          %143 = vsyncadd %s136, %s142
          %s144 = smul.addr %s24, 2
          %s145 = sadd.s32 %s140, %s144
          %s146 = smul.addr %s145, 64
          %s147 = scalar_lea.hbm %s0, %s146
          %s149 = sshll.u32 %s139, 4
          %s150 = int_to_ptr.vmem [resolvable:$true] %s149
          %152 = dma.hbm_to_vmem [thread:$0]  %s147, 128, %s150, %s136
        $region20: #{tpu_custom_call.1} parent=15 // pred_fallthru
          _
        // Predicated region
        $region21: #{tpu_custom_call.1} parent=15 // pred_check
          %p153 = pneg %p79
        $region22: #{tpu_custom_call.1} parent=15 // pred_check_branch
          %155 = sbr.rel (%p153) target = $region24
        $region23: #{tpu_custom_call.1} parent=15 // pred_region
          %s156 = sand.u32 %s69, 1
          %s157 = scalar_lea.sflag [#allocation6], %s156
          %s158 = sand.u32 %s69, 1
          %s159 = smul.addr %s158, 8
          %s160 = scalar_lea.vmem [#allocation5], %s159
          %s161 = smul.u32 2, %s25
          %s163 = ssub.s32 128, 128
          %164 = vsyncadd %s157, %s163
          %s165 = smul.addr %s24, 2
          %s166 = sadd.s32 %s161, %s165
          %s167 = smul.addr %s166, 64
          %s168 = scalar_lea.hbm %s1, %s167
          %s170 = sshll.u32 %s160, 4
          %s171 = int_to_ptr.vmem [resolvable:$true] %s170
          %173 = dma.hbm_to_vmem [thread:$0]  %s168, 128, %s171, %s157
        $region24: #{tpu_custom_call.1} parent=15 // pred_fallthru
          _
      $region16: #{tpu_custom_call.1} parent=5 // pred_fallthru
        _
      %p174 = scmp.le.s32.totalorder 1, %s17
      %p175 = scmp.lt.s32.totalorder %s17, 3
      %p176 = pnand %p174, %p175
      %p177 = pneg %p176
      // Predicated region
      $region25: #{tpu_custom_call.1} parent=5 // pred_check
        _
      $region26: #{tpu_custom_call.1} parent=5 // pred_check_branch
        %179 = sbr.rel (%p176) target = $region28
      $region27: #{tpu_custom_call.1} parent=5 // pred_region
        %s180 = ssub.s32 %s17, 1
        %s181 = sand.u32 %s44, 1
        %s182 = scalar_lea.sflag [#allocation3], %s181
        %s183 = sand.u32 %s44, 1
        %s184 = smul.addr %s183, 8
        %s185 = scalar_lea.vmem [#allocation2], %s184
        // Predicated region
        $region29: #{tpu_custom_call.1} parent=27 // pred_check
          %p186 = pneg %p57
        $region30: #{tpu_custom_call.1} parent=27 // pred_check_branch
          %188 = sbr.rel (%p186) target = $region32
        $region31: #{tpu_custom_call.1} parent=27 // pred_region
          %189 = dma.done %s182, 128
        $region32: #{tpu_custom_call.1} parent=27 // pred_fallthru
          _
        %s190 = sand.u32 %s72, 1
        %s191 = scalar_lea.sflag [#allocation6], %s190
        %s192 = sand.u32 %s72, 1
        %s193 = smul.addr %s192, 8
        %s194 = scalar_lea.vmem [#allocation5], %s193
        // Predicated region
        $region33: #{tpu_custom_call.1} parent=27 // pred_check
          %p195 = pneg %p85
        $region34: #{tpu_custom_call.1} parent=27 // pred_check_branch
          %197 = sbr.rel (%p195) target = $region36
        $region35: #{tpu_custom_call.1} parent=27 // pred_region
          %198 = dma.done %s191, 128
        $region36: #{tpu_custom_call.1} parent=27 // pred_fallthru
          _
        %s199 = sand.u32 %s44, 1
        %s200 = scalar_lea.sflag [#allocation3], %s199
        %s201 = sand.u32 %s44, 1
        %s202 = smul.addr %s201, 8
        %s203 = scalar_lea.vmem [#allocation2], %s202
        %p204 = pneg %p57
        %p205 = pneg %p54
        %s206 = sand.u32 %s72, 1
        %s207 = scalar_lea.sflag [#allocation6], %s206
        %s208 = sand.u32 %s72, 1
        %s209 = smul.addr %s208, 8
        %s210 = scalar_lea.vmem [#allocation5], %s209
        %p211 = pneg %p85
        %p212 = pneg %p82
        %p213 = pneg %p113
        %p214 = pneg %p110
        %s215 = sand.u32 %s100, 1
        %s216 = scalar_lea.sflag [#allocation4], %s215
        %s217 = sand.u32 %s100, 1
        %s218 = smul.addr %s217, 8
        %s219 = scalar_lea.vmem [#allocation7], %s218
        %s220 = smul.u32 2, %s27
        %s221 = smul.u32 2, %s27
        %s222 = smul.u32 2, %s27
        %v223 = vld [vmem:[%s185] sm:$0xff]
        %v224 = vld [vmem:[%s194] sm:$0xff]
        %v225 = vadd.f32 %v223, %v224
        %v227 = vcombine.high %v225, %v225
        %vm229 = vcmask 1043456
        %v230 = vsel %vm229, %v225, 0.0
        %v231 = vrot.slane %v230, 4
        %v232 = vadd.f32 %v230, %v231
        %v233 = vrot.slane %v232, 2
        %v234 = vadd.f32 %v232, %v233
        %v235 = vrot.slane %v234, 1
        %v236 = vadd.f32 %v234, %v235
        %v237 = vsel %vm229, %v227, 0.0
        %v238 = vrot.slane %v237, 4
        %v239 = vadd.f32 %v237, %v238
        %v240 = vrot.slane %v239, 2
        %v241 = vadd.f32 %v239, %v240
        %v242 = vrot.slane %v241, 1
        %v243 = vadd.f32 %v241, %v242
        %v244 = vmul.f32 %v236, 0.125
        %v245 = vmul.f32 %v243, 0.125
        %v246 = vmax.f32 %v223, %v224
        %v248 = vcombine.high %v246, %v246
        %v250 = vsel %vm229, %v246, -inf
        %v251 = vrot.slane %v250, 4
        %v252 = vmax.f32 %v250, %v251
        %v253 = vrot.slane %v252, 2
        %v254 = vmax.f32 %v252, %v253
        %v255 = vrot.slane %v254, 1
        %v256 = vmax.f32 %v254, %v255
        %v257 = vsel %vm229, %v248, -inf
        %v258 = vrot.slane %v257, 4
        %v259 = vmax.f32 %v257, %v258
        %v260 = vrot.slane %v259, 2
        %v261 = vmax.f32 %v259, %v260
        %v262 = vrot.slane %v261, 1
        %v263 = vmax.f32 %v261, %v262
        %v264 = vxor.u32 %v244, 2147483648
        %v265 = vxor.u32 %v245, 2147483648
        %v266 = vmul.f32 %v264, 1.442695
        %v267 = vpow.pop %v266
        %v268 = vmul.f32 %v265, 1.442695
        %v269 = vpow.pop %v268
        %v270 = vadd.f32 %v267, 1.0
        %v271 = vadd.f32 %v269, 1.0
        %v272 = vrcp.pop %v270
        %v273 = vmul.f32 1.0, %v272
        %v274 = vrcp.pop %v271
        %v275 = vmul.f32 1.0, %v274
        %v276 = vxor.u32 %v256, 2147483648
        %v277 = vxor.u32 %v263, 2147483648
        %v278 = vmul.f32 %v276, 1.442695
        %v279 = vpow.pop %v278
        %v280 = vmul.f32 %v277, 1.442695
        %v281 = vpow.pop %v280
        %v282 = vadd.f32 %v279, 1.0
        %v283 = vadd.f32 %v281, 1.0
        %v284 = vrcp.pop %v282
        %v285 = vmul.f32 1.0, %v284
        %v286 = vrcp.pop %v283
        %v287 = vmul.f32 1.0, %v286
        %v288 = vmul.f32 %v273, %v285
        %v289 = vmul.f32 %v275, %v287
        %v290 = vmul.f32 %v288, 0.5
        %v291 = vmul.f32 %v289, 0.5
        %v294 = vcombine.low %v290, %v291
        %v296 = vmul.f32 %v225, %v294
        %297 = vst [vmem:[%s219] sm:$0xff] %v296
        %s298 = sand.u32 %s100, 1
        %s299 = scalar_lea.sflag [#allocation4], %s298
        %s300 = sand.u32 %s100, 1
        %s301 = smul.addr %s300, 8
        %s302 = scalar_lea.vmem [#allocation7], %s301
        // Predicated region
        $region37: #{tpu_custom_call.1} parent=27 // pred_check
          %p303 = pneg %p110
        $region38: #{tpu_custom_call.1} parent=27 // pred_check_branch
          %305 = sbr.rel (%p303) target = $region40
        $region39: #{tpu_custom_call.1} parent=27 // pred_region
          %s306 = smul.u32 2, %s27
          %s308 = ssub.s32 128, 128
          %309 = vsyncadd %s299, %s308
          %s310 = smul.addr %s26, 2
          %s311 = sadd.s32 %s306, %s310
          %s312 = smul.addr %s311, 64
          %s313 = scalar_lea.hbm %s2, %s312
          %s315 = sshll.u32 %s302, 4
          %s316 = int_to_ptr.vmem [resolvable:$true] %s315
          %318 = dma.vmem_to_hbm [thread:$0]  %s316, 128, %s313, %s299
        $region40: #{tpu_custom_call.1} parent=27 // pred_fallthru
          _
      $region28: #{tpu_custom_call.1} parent=5 // pred_fallthru
        _
      %p319 = scmp.le.s32.totalorder 2, %s17
      // Predicated region
      $region41: #{tpu_custom_call.1} parent=5 // pred_check
        %p320 = pneg %p319
      $region42: #{tpu_custom_call.1} parent=5 // pred_check_branch
        %322 = sbr.rel (%p320) target = $region44
      $region43: #{tpu_custom_call.1} parent=5 // pred_region
        %s323 = ssub.s32 %s17, 2
        // Predicated region
        $region45: #{tpu_custom_call.1} parent=43 // pred_check
          %p324 = pneg %p116
        $region46: #{tpu_custom_call.1} parent=43 // pred_check_branch
          %326 = sbr.rel (%p324) target = $region48
        $region47: #{tpu_custom_call.1} parent=43 // pred_region
          %s327 = sand.u32 %s101, 1
          %s328 = scalar_lea.sflag [#allocation4], %s327
          %s329 = sand.u32 %s101, 1
          %s330 = smul.addr %s329, 8
          %s331 = scalar_lea.vmem [#allocation7], %s330
          %332 = dma.done %s328, 128
        $region48: #{tpu_custom_call.1} parent=43 // pred_fallthru
          _
      $region44: #{tpu_custom_call.1} parent=5 // pred_fallthru
        _
    $region6: #{tpu_custom_call.1} parent=1 // loop_footer
      %s21 = sadd.s32 1, %s17
    $region7: #{tpu_custom_call.1} parent=1 // loop_footer_branch
      %16 = sbr.rel target = $region3
    $region8: #{tpu_custom_call.1} parent=1 // loop_exit
      _
    %333 = vsyncpa [#allocation3], 1
    %s334 = scalar_lea.sflag [#allocation3], 1
    %335 = vsyncpa %s334, 1
    %336 = vsyncpa [#allocation6], 1
    %s337 = scalar_lea.sflag [#allocation6], 1
    %338 = vsyncpa %s337, 1
    %339 = vsyncpa [#allocation4], 1
    %s340 = scalar_lea.sflag [#allocation4], 1
    %341 = vsyncpa %s340, 1

</llo_original>
